<compile_context>
chip_gen: v7x
topology: tpu7x:2x2x1
jax: 0.10.0
libtpu: 0.0.40
codegen_flags: <defaults>
</compile_context>

<pallas_src>
import functools
import math

import numpy as np
import jax
import jax.numpy as jnp
from jax.experimental import pallas as pl
from jax.experimental.pallas import tpu as pltpu

N_HEADS = 8
# TODO(synk): reference UNET_ResidualBlock default n_time=1280 is inconsistent with
# TimeEmbedding(320)'s output (linear_2: 1280->320); use n_time=320 so shapes typecheck.
N_TIME = 320


def _pick_vmem_limit():
    # v5e/v6e have 128 MiB VMEM -> allow large, deep tiles; keep 40 MiB for v7x (64 MiB/TC).
    try:
        info = pltpu.get_tpu_info()
        cap = getattr(info, "vmem_capacity_bytes", None)
        if cap is not None and cap >= 100 * 1024 * 1024:
            return 96 * 1024 * 1024
    except Exception:
        pass
    return 40 * 1024 * 1024


_VMEM_LIMIT = _pick_vmem_limit()


# --------------------------------------------------------------------------
# Tiling schedules (shared by init + wrapper so weights can be pre-padded on K)
# --------------------------------------------------------------------------

_TK_CANDIDATES = (1536, 1280, 1152, 1024, 896, 768, 640, 512, 384)  # all 128-multiples


def _k_schedule(K):
    """Return (padded K, K-tile).  Splits K into >=2 lane-aligned tiles when K >= 768;
    pads to a 1024 multiple when K > 1536 and no clean split exists.  Idempotent."""
    if K < 768:
        return K, K
    for tk in _TK_CANDIDATES:
        if K % tk == 0 and K // tk >= 2:
            return K, tk
    if K <= 1536:
        return K, K
    Kp = ((K + 1023) // 1024) * 1024
    return Kp, 1024


def _tile_m(M):
    if M <= 512:
        return M                      # weights streamed exactly once
    for t in (512, 256, 128):
        if M % t == 0:
            return t
    return M


def _tile_n(N):
    if N >= 1280 and N % 640 == 0:
        return 640
    if N > 1024 and N % 512 == 0:
        return 512
    return N


# --------------------------------------------------------------------------
# Pallas kernels
# --------------------------------------------------------------------------

def _make_linear_kernel(in_op, act, has_residual, single_k):
    """Tiled matmul: optional pre-op (silu / layernorm, computed f32 from bf16 input),
    bf16 MXU matmul with f32 accumulation, fused bias + residual + optional SiLU epilogue.
    When single_k the accumulator scratch is bypassed entirely."""
    has_ln = in_op == "ln"

    def kernel(*refs):
        i = 0
        x_ref = refs[i]; i += 1
        if has_ln:
            lg_ref, lb_ref = refs[i], refs[i + 1]; i += 2
        w_ref, b_ref = refs[i], refs[i + 1]; i += 2
        r_ref = None
        if has_residual:
            r_ref = refs[i]; i += 1
        o_ref = refs[i]; i += 1
        acc_ref = None if single_k else refs[i]

        x = x_ref[...]                                   # bf16 block
        if in_op == "silu":
            xf = x.astype(jnp.float32)
            x = (xf * jax.nn.sigmoid(xf)).astype(jnp.bfloat16)
        elif in_op == "ln":
            xf = x.astype(jnp.float32)
            mu = jnp.mean(xf, axis=-1, keepdims=True)
            var = jnp.mean(jnp.square(xf - mu), axis=-1, keepdims=True)
            xf = (xf - mu) * jax.lax.rsqrt(var + 1e-5)
            x = (xf * lg_ref[...] + lb_ref[...]).astype(jnp.bfloat16)

        partial = jnp.dot(x, w_ref[...], preferred_element_type=jnp.float32)

        def epilogue(acc):
            y = acc + b_ref[...]
            if has_residual:
                y = y + r_ref[...].astype(jnp.float32)
            if act == "silu":
                y = y * jax.nn.sigmoid(y)
            o_ref[...] = y.astype(o_ref.dtype)

        if single_k:
            epilogue(partial)
        else:
            kk = pl.program_id(2)

            @pl.when(kk == 0)
            def _init():
                acc_ref[...] = jnp.zeros_like(acc_ref)

            acc_ref[...] += partial

            @pl.when(kk == pl.num_programs(2) - 1)
            def _finalize():
                epilogue(acc_ref[...])

    return kernel


@functools.partial(jax.jit, static_argnames=("in_op", "act", "out_dtype"))
def pallas_linear(x, w, b, ln_g=None, ln_b=None, residual=None,
                  in_op="none", act="none", out_dtype=jnp.bfloat16):
    """x: (M, K), w: (Kp, N) bf16 (K possibly pre-padded), b: (1, N) f32.
    Returns (M, N) in out_dtype with fused pre-op / bias / residual / SiLU."""
    M, K = x.shape
    Kp, N = w.shape
    Kp2, tk = _k_schedule(Kp)
    assert Kp2 == Kp
    x = x.astype(jnp.bfloat16)
    if Kp > K:                          # rare fallback; convs pre-pad in the im2col concat
        x = jnp.pad(x, ((0, 0), (0, Kp - K)))

    tm = _tile_m(M)
    tn = _tile_n(N)
    nm, nn, nk = M // tm, N // tn, Kp // tk
    has_ln = ln_g is not None
    has_res = residual is not None
    if has_ln:
        assert nk == 1 and Kp == K      # LayerNorm needs the full feature dim per block

    # If the grid would collapse to a single step, split M purely for DMA/compute overlap.
    if nm * nn * nk == 1 and M >= 256 and (M // 2) % 16 == 0:
        tm = M // 2
        nm = 2

    inputs = [x]
    in_specs = [pl.BlockSpec((tm, tk), lambda i, j, k: (i, k))]
    if has_ln:
        inputs += [ln_g.reshape(1, Kp).astype(jnp.float32),
                   ln_b.reshape(1, Kp).astype(jnp.float32)]
        in_specs += [pl.BlockSpec((1, Kp), lambda i, j, k: (0, 0)),
                     pl.BlockSpec((1, Kp), lambda i, j, k: (0, 0))]
    inputs += [w, b.reshape(1, N).astype(jnp.float32)]
    in_specs += [pl.BlockSpec((tk, tn), lambda i, j, k: (k, j)),
                 pl.BlockSpec((1, tn), lambda i, j, k: (0, j))]
    if has_res:
        inputs.append(residual)
        in_specs.append(pl.BlockSpec((tm, tn), lambda i, j, k: (i, j)))

    single_k = nk == 1
    scratch = [] if single_k else [pltpu.VMEM((tm, tn), jnp.float32)]

    return pl.pallas_call(
        _make_linear_kernel(in_op=in_op, act=act, has_residual=has_res,
                            single_k=single_k),
        out_shape=jax.ShapeDtypeStruct((M, N), out_dtype),
        grid=(nm, nn, nk),
        in_specs=in_specs,
        out_specs=pl.BlockSpec((tm, tn), lambda i, j, k: (i, j)),
        scratch_shapes=scratch,
        compiler_params=pltpu.CompilerParams(
            dimension_semantics=("parallel", "parallel", "arbitrary"),
            vmem_limit_bytes=_VMEM_LIMIT),
    )(*inputs)


def _make_groupnorm_kernel(eps, silu, has_pre_add, inv_n):
    """Per-sample GroupNorm on (HW, C) token layout.  bf16 in/out, stats in f32.
    Optional fused pre-add of a (1,C) vector (time embedding) and fused SiLU."""

    def kernel(*refs):
        i = 0
        x_ref = refs[i]; i += 1
        t_ref = None
        if has_pre_add:
            t_ref = refs[i]; i += 1
        g_ref, b_ref, s_ref, st_ref, o_ref = refs[i:i + 5]

        x = x_ref[0].astype(jnp.float32)                     # (HW, C)
        if has_pre_add:
            x = x + t_ref[...].astype(jnp.float32)
        sum_c = jnp.sum(x, axis=0, keepdims=True)            # (1, C)
        mean_g = jnp.dot(sum_c, s_ref[...],
                         preferred_element_type=jnp.float32) * inv_n   # (1, G)
        mean_c = jnp.dot(mean_g, st_ref[...],
                         preferred_element_type=jnp.float32)           # (1, C)
        xc = x - mean_c
        ssq_c = jnp.sum(xc * xc, axis=0, keepdims=True)
        var_g = jnp.dot(ssq_c, s_ref[...],
                        preferred_element_type=jnp.float32) * inv_n
        rstd_c = jnp.dot(jax.lax.rsqrt(var_g + eps), st_ref[...],
                         preferred_element_type=jnp.float32)
        y = xc * rstd_c * g_ref[...] + b_ref[...]
        if silu:
            y = y * jax.nn.sigmoid(y)
        o_ref[0] = y.astype(o_ref.dtype)

    return kernel


@functools.partial(jax.jit, static_argnames=("eps", "silu", "num_groups"))
def pallas_groupnorm(x, gamma, beta, eps=1e-5, silu=False, pre_add=None, num_groups=32):
    """GroupNorm(32, C) on NHWC input (bf16), optional fused SiLU / pre-add.  bf16 NHWC out."""
    B, H, W, C = x.shape
    HW = H * W
    G = num_groups
    cs = C // G
    sel = jnp.repeat(jnp.eye(G, dtype=jnp.float32), cs, axis=0)     # (C, G)
    sel_t = sel.T                                                   # (G, C)
    inv_n = 1.0 / float(HW * cs)

    inputs = [x.reshape(B, HW, C)]
    in_specs = [pl.BlockSpec((1, HW, C), lambda b: (b, 0, 0))]
    has_pre = pre_add is not None
    if has_pre:
        # TODO(synk): (1,C) pre_add broadcast over the batch -- matches the reference's
        # single-timestep `time.unsqueeze(-1).unsqueeze(-1)` broadcast.
        inputs.append(pre_add.reshape(1, C).astype(jnp.float32))
        in_specs.append(pl.BlockSpec((1, C), lambda b: (0, 0)))
    inputs += [gamma.reshape(1, C).astype(jnp.float32),
               beta.reshape(1, C).astype(jnp.float32), sel, sel_t]
    in_specs += [pl.BlockSpec((1, C), lambda b: (0, 0)),
                 pl.BlockSpec((1, C), lambda b: (0, 0)),
                 pl.BlockSpec((C, G), lambda b: (0, 0)),
                 pl.BlockSpec((G, C), lambda b: (0, 0))]

    out = pl.pallas_call(
        _make_groupnorm_kernel(eps=eps, silu=silu, has_pre_add=has_pre, inv_n=inv_n),
        out_shape=jax.ShapeDtypeStruct((B, HW, C), jnp.bfloat16),
        grid=(B,),
        in_specs=in_specs,
        out_specs=pl.BlockSpec((1, HW, C), lambda b: (b, 0, 0)),
        compiler_params=pltpu.CompilerParams(
            dimension_semantics=("parallel",), vmem_limit_bytes=_VMEM_LIMIT),
    )(*inputs)
    return out.reshape(B, H, W, C)


def _make_attention_kernel(n_heads, dh, scale):
    """All heads of one batch element per grid step, lane-dense (S, C) in and out.
    Heads are sliced in-kernel; the output is written as one full-width slab."""

    def kernel(q_ref, k_ref, v_ref, o_ref):
        q = q_ref[0]                                         # (S, C) bf16
        k = k_ref[0]                                         # (L, C) bf16
        v = v_ref[0]
        outs = []
        for h in range(n_heads):
            lo, hi = h * dh, (h + 1) * dh
            qh, kh, vh = q[:, lo:hi], k[:, lo:hi], v[:, lo:hi]
            s = jax.lax.dot_general(qh, kh, (((1,), (1,)), ((), ())),
                                    preferred_element_type=jnp.float32) * scale
            m = jnp.max(s, axis=-1, keepdims=True)
            p = jnp.exp(s - m)
            denom = jnp.sum(p, axis=-1, keepdims=True)
            p = p * pl.reciprocal(denom, approx=True)
            oh = jax.lax.dot_general(p.astype(jnp.bfloat16), vh,
                                     (((1,), (0,)), ((), ())),
                                     preferred_element_type=jnp.float32)
            outs.append(oh)
        o_ref[0] = jnp.concatenate(outs, axis=-1).astype(o_ref.dtype)

    return kernel


@functools.partial(jax.jit, static_argnames=("n_heads",))
def pallas_attention(q, k, v, n_heads=N_HEADS):
    """q: (B, S, C), k/v: (B, L, C) -> (B, S, C) bf16.  No head transpose glue."""
    B, S, C = q.shape
    L = k.shape[1]
    dh = C // n_heads
    scale = 1.0 / math.sqrt(dh)
    return pl.pallas_call(
        _make_attention_kernel(n_heads, dh, scale),
        out_shape=jax.ShapeDtypeStruct((B, S, C), jnp.bfloat16),
        grid=(B,),
        in_specs=[
            pl.BlockSpec((1, S, C), lambda b: (b, 0, 0)),
            pl.BlockSpec((1, L, C), lambda b: (b, 0, 0)),
            pl.BlockSpec((1, L, C), lambda b: (b, 0, 0)),
        ],
        out_specs=pl.BlockSpec((1, S, C), lambda b: (b, 0, 0)),
        compiler_params=pltpu.CompilerParams(
            dimension_semantics=("parallel",), vmem_limit_bytes=_VMEM_LIMIT),
    )(q.astype(jnp.bfloat16), k.astype(jnp.bfloat16), v.astype(jnp.bfloat16))


def _geglu_kernel(x_ref, lg_ref, lb_ref, wa_ref, wg_ref, ba_ref, bg_ref, o_ref):
    x = x_ref[...].astype(jnp.float32)                       # (tm, C)
    mu = jnp.mean(x, axis=-1, keepdims=True)
    var = jnp.mean(jnp.square(x - mu), axis=-1, keepdims=True)
    x = (x - mu) * jax.lax.rsqrt(var + 1e-5) * lg_ref[...] + lb_ref[...]
    xb = x.astype(jnp.bfloat16)
    a = jnp.dot(xb, wa_ref[...], preferred_element_type=jnp.float32) + ba_ref[...]
    g = jnp.dot(xb, wg_ref[...], preferred_element_type=jnp.float32) + bg_ref[...]
    # Reference does `x = x + F.gelu(gate)` (add, not multiply) -> kept as-is.
    # TODO(synk): torch F.gelu default is the exact erf form; tanh approximation used here.
    o_ref[...] = (a + jax.nn.gelu(g, approximate=True)).astype(o_ref.dtype)


@jax.jit
def pallas_geglu(x, ln_g, ln_b, wa, wg, ba, bg):
    """Fused LayerNorm + linear_geglu_1 + (a + gelu(gate)).  x: (M, C) bf16 -> (M, 4C) bf16."""
    M, C = x.shape
    N4 = wa.shape[1]
    tm = _tile_m(M)
    tn = _tile_n(N4)
    nm, nn = M // tm, N4 // tn
    return pl.pallas_call(
        _geglu_kernel,
        out_shape=jax.ShapeDtypeStruct((M, N4), jnp.bfloat16),
        grid=(nm, nn),
        in_specs=[
            pl.BlockSpec((tm, C), lambda i, j: (i, 0)),
            pl.BlockSpec((1, C), lambda i, j: (0, 0)),
            pl.BlockSpec((1, C), lambda i, j: (0, 0)),
            pl.BlockSpec((C, tn), lambda i, j: (0, j)),
            pl.BlockSpec((C, tn), lambda i, j: (0, j)),
            pl.BlockSpec((1, tn), lambda i, j: (0, j)),
            pl.BlockSpec((1, tn), lambda i, j: (0, j)),
        ],
        out_specs=pl.BlockSpec((tm, tn), lambda i, j: (i, j)),
        compiler_params=pltpu.CompilerParams(
            dimension_semantics=("parallel", "parallel"),
            vmem_limit_bytes=_VMEM_LIMIT),
    )(x.astype(jnp.bfloat16), ln_g.astype(jnp.float32), ln_b.astype(jnp.float32),
      wa, wg, ba, bg)


# --------------------------------------------------------------------------
# Convolution = im2col (XLA glue, bf16) + tiled Pallas matmul
# --------------------------------------------------------------------------

def conv2d(x, cp, k, stride=1, pad=0, residual=None, out_dtype=jnp.bfloat16):
    """x: NHWC.  cp['w'] is the im2col matrix (Kp, Cout) bf16, rows ordered (ky,kx,cin)
    followed by zero-padded rows (K padding folded into the im2col concat below)."""
    B, H, W, C = x.shape
    xb = x.astype(jnp.bfloat16)
    Kp = cp["w"].shape[0]
    if k == 1 and stride == 1 and pad == 0:
        Ho, Wo = H, W
        assert Kp == C
        patches = xb.reshape(B * H * W, C)
    else:
        xp = jnp.pad(xb, ((0, 0), (pad, pad), (pad, pad), (0, 0)))
        Ho = (H + 2 * pad - k) // stride + 1
        Wo = (W + 2 * pad - k) // stride + 1
        cols = []
        for i in range(k):
            for j in range(k):
                cols.append(xp[:, i:i + stride * Ho:stride, j:j + stride * Wo:stride, :])
        K = k * k * C
        if Kp > K:      # fold the K-axis padding into the same concat (no extra copy pass)
            cols.append(jnp.zeros((B, Ho, Wo, Kp - K), jnp.bfloat16))
        patches = jnp.concatenate(cols, axis=-1).reshape(B * Ho * Wo, Kp)
    if residual is not None:
        residual = residual.reshape(B * Ho * Wo, -1)
    y = pallas_linear(patches, cp["w"], cp["b"], residual=residual, out_dtype=out_dtype)
    return y.reshape(B, Ho, Wo, cp["w"].shape[1])


# --------------------------------------------------------------------------
# Parameter initialization (deterministic, synthetic)
# --------------------------------------------------------------------------

class _KeyGen:
    def __init__(self, seed):
        self._key = jax.random.PRNGKey(seed)

    def __call__(self):
        self._key, sub = jax.random.split(self._key)
        return sub


def _dense(kg, fan_in, shape):
    return jax.random.normal(kg(), shape, jnp.float32) * (1.0 / np.sqrt(fan_in))


def init_linear(kg, cin, cout):
    Kp, _ = _k_schedule(cin)
    w = _dense(kg, cin, (cin, cout))
    if Kp > cin:
        w = jnp.pad(w, ((0, Kp - cin), (0, 0)))
    return {"w": w.astype(jnp.bfloat16), "b": jnp.zeros((1, cout), jnp.float32)}


def init_conv(kg, cin, cout, k):
    K = k * k * cin
    Kp, _ = _k_schedule(K)
    w = _dense(kg, K, (K, cout))
    if Kp > K:
        w = jnp.pad(w, ((0, Kp - K), (0, 0)))
    return {"w": w.astype(jnp.bfloat16), "b": jnp.zeros((1, cout), jnp.float32)}


def init_norm(c):
    return {"g": jnp.ones((1, c), jnp.float32), "b": jnp.zeros((1, c), jnp.float32)}


def init_residual_block(kg, cin, cout, n_time=N_TIME):
    return {
        "gn1": init_norm(cin),
        "conv1": init_conv(kg, cin, cout, 3),
        "time_lin": init_linear(kg, n_time, cout),
        "gn2": init_norm(cout),
        "conv2": init_conv(kg, cout, cout, 3),
        "skip": None if cin == cout else init_conv(kg, cin, cout, 1),
    }


def init_attention_block(kg, n_heads, n_emb, d_context=768):
    C = n_heads * n_emb
    return {
        "gn": init_norm(C),
        "conv_in": init_conv(kg, C, C, 1),
        "ln1": init_norm(C),
        "sa_in": init_linear(kg, C, 3 * C),      # in_proj_bias=False -> zero bias
        "sa_out": init_linear(kg, C, C),
        "ln2": init_norm(C),
        "ca_q": init_linear(kg, C, C),
        "ca_k": init_linear(kg, d_context, C),
        "ca_v": init_linear(kg, d_context, C),
        "ca_out": init_linear(kg, C, C),
        "ln3": init_norm(C),
        "geglu_a": init_linear(kg, C, 4 * C),    # first half of linear_geglu_1
        "geglu_g": init_linear(kg, C, 4 * C),    # gate half of linear_geglu_1
        "geglu2": init_linear(kg, 4 * C, C),
        "conv_out": init_conv(kg, C, C, 1),
    }


def init_unet(kg):
    return {
        "enc0": init_conv(kg, 4, 320, 3),
        "enc1_res": init_residual_block(kg, 320, 320),
        "enc1_att": init_attention_block(kg, 8, 40),
        "down": init_conv(kg, 320, 320, 3),
        "enc2_res": init_residual_block(kg, 320, 640),
        "enc2_att": init_attention_block(kg, 8, 80),
        "mid_res1": init_residual_block(kg, 640, 640),
        "mid_att": init_attention_block(kg, 8, 80),
        "mid_res2": init_residual_block(kg, 640, 640),
        "dec0_res": init_residual_block(kg, 1280, 640),
        "dec0_att": init_attention_block(kg, 8, 80),
        "dec1_res": init_residual_block(kg, 960, 640),
        "dec1_att": init_attention_block(kg, 8, 80),
        "up": init_conv(kg, 640, 640, 3),
        "dec2_res": init_residual_block(kg, 960, 320),
        "dec2_att": init_attention_block(kg, 8, 40),
        "dec3_res": init_residual_block(kg, 640, 320),
        "dec3_att": init_attention_block(kg, 8, 40),
    }


def init_diffusion(seed=1234):
    kg = _KeyGen(seed)
    return {
        "time_emb": {"l1": init_linear(kg, 320, 4 * 320),
                     "l2": init_linear(kg, 4 * 320, 320)},
        "unet": init_unet(kg),
        "final": {"gn": init_norm(320), "conv": init_conv(kg, 320, 4, 3)},
    }


# --------------------------------------------------------------------------
# Module forward passes (built from the Pallas kernels above, NHWC internally)
# --------------------------------------------------------------------------

def time_embedding(p, t):
    h = pallas_linear(t, p["l1"]["w"], p["l1"]["b"], act="silu",
                      out_dtype=jnp.float32)                            # linear_1 + SiLU
    return pallas_linear(h, p["l2"]["w"], p["l2"]["b"],
                         out_dtype=jnp.float32)                         # linear_2


def residual_block(p, x, t):
    B, H, W, Cin = x.shape
    resid = x
    h = pallas_groupnorm(x, p["gn1"]["g"], p["gn1"]["b"], eps=1e-5, silu=True)
    h = conv2d(h, p["conv1"], k=3, pad=1)
    tproj = pallas_linear(t, p["time_lin"]["w"], p["time_lin"]["b"],
                          in_op="silu", out_dtype=jnp.float32)          # (1, Cout)
    # merge = conv1_out + time (fused), then GroupNorm_merged + SiLU
    h = pallas_groupnorm(h, p["gn2"]["g"], p["gn2"]["b"], eps=1e-5, silu=True,
                         pre_add=tproj)
    if p["skip"] is None:
        skip = resid
    else:
        skip = pallas_linear(resid.reshape(B * H * W, Cin),
                             p["skip"]["w"], p["skip"]["b"]).reshape(B, H, W, -1)
    return conv2d(h, p["conv2"], k=3, pad=1, residual=skip)             # + skip fused


def attention_block(p, x, context, n_heads=N_HEADS):
    B, H, W, C = x.shape
    S = H * W
    resid_long = x.reshape(B * S, C)

    h = pallas_groupnorm(x, p["gn"]["g"], p["gn"]["b"], eps=1e-6, silu=False)
    x1 = pallas_linear(h.reshape(B * S, C), p["conv_in"]["w"], p["conv_in"]["b"])

    # self attention (LayerNorm_1 fused into the qkv projection, residual fused into out)
    qkv = pallas_linear(x1, p["sa_in"]["w"], p["sa_in"]["b"],
                        ln_g=p["ln1"]["g"], ln_b=p["ln1"]["b"], in_op="ln")
    qkv = qkv.reshape(B, S, 3 * C)
    q, k, v = qkv[..., :C], qkv[..., C:2 * C], qkv[..., 2 * C:]
    o = pallas_attention(q, k, v, n_heads=n_heads).reshape(B * S, C)
    x2 = pallas_linear(o, p["sa_out"]["w"], p["sa_out"]["b"], residual=x1)

    # cross attention (LayerNorm_2 fused into the q projection)
    Bc, L, Dc = context.shape
    ctx = context.reshape(Bc * L, Dc)
    q = pallas_linear(x2, p["ca_q"]["w"], p["ca_q"]["b"],
                      ln_g=p["ln2"]["g"], ln_b=p["ln2"]["b"], in_op="ln").reshape(B, S, C)
    kk = pallas_linear(ctx, p["ca_k"]["w"], p["ca_k"]["b"]).reshape(B, L, C)
    vv = pallas_linear(ctx, p["ca_v"]["w"], p["ca_v"]["b"]).reshape(B, L, C)
    o = pallas_attention(q, kk, vv, n_heads=n_heads).reshape(B * S, C)
    x3 = pallas_linear(o, p["ca_out"]["w"], p["ca_out"]["b"], residual=x2)

    # GEGLU (LayerNorm_3 + linear_geglu_1 + a + gelu(gate) fused), then geglu_2 + residual
    g = pallas_geglu(x3, p["ln3"]["g"], p["ln3"]["b"],
                     p["geglu_a"]["w"], p["geglu_g"]["w"],
                     p["geglu_a"]["b"], p["geglu_g"]["b"])
    x4 = pallas_linear(g, p["geglu2"]["w"], p["geglu2"]["b"], residual=x3)

    # conv_output (1x1) + long residual, fused
    out = pallas_linear(x4, p["conv_out"]["w"], p["conv_out"]["b"], residual=resid_long)
    return out.reshape(B, H, W, C)


def upsample(p, x):
    # TODO(synk): F.interpolate(scale_factor=2, mode='nearest') is pure data duplication
    # and stays as XLA glue.
    x = jnp.repeat(jnp.repeat(x, 2, axis=1), 2, axis=2)
    return conv2d(x, p, k=3, pad=1)


def output_layer(p, x):
    h = pallas_groupnorm(x, p["gn"]["g"], p["gn"]["b"], eps=1e-5, silu=True)
    return conv2d(h, p["conv"], k=3, pad=1, out_dtype=jnp.float32)


def unet_forward(p, x, context, t):
    # TODO(synk): reference UNET defines `__int__` (typo) and no forward(); this reproduces
    # the standard SD encoder/skip/bottleneck/decoder wiring with one down/up level, using
    # only (in_channels, out_channels) block configurations that appear in the reference.
    skips = []
    x = conv2d(x, p["enc0"], k=3, pad=1)
    skips.append(x)                                                 # 320 @ 16x16
    x = residual_block(p["enc1_res"], x, t)
    x = attention_block(p["enc1_att"], x, context)
    skips.append(x)                                                 # 320 @ 16x16
    x = conv2d(x, p["down"], k=3, stride=2, pad=1)
    skips.append(x)                                                 # 320 @ 8x8
    x = residual_block(p["enc2_res"], x, t)
    x = attention_block(p["enc2_att"], x, context)
    skips.append(x)                                                 # 640 @ 8x8

    x = residual_block(p["mid_res1"], x, t)
    x = attention_block(p["mid_att"], x, context)
    x = residual_block(p["mid_res2"], x, t)

    x = jnp.concatenate([x, skips.pop()], axis=-1)                  # 1280 @ 8x8
    x = residual_block(p["dec0_res"], x, t)
    x = attention_block(p["dec0_att"], x, context)
    x = jnp.concatenate([x, skips.pop()], axis=-1)                  # 960 @ 8x8
    x = residual_block(p["dec1_res"], x, t)
    x = attention_block(p["dec1_att"], x, context)
    x = upsample(p["up"], x)                                        # 640 @ 16x16
    x = jnp.concatenate([x, skips.pop()], axis=-1)                  # 960 @ 16x16
    x = residual_block(p["dec2_res"], x, t)
    x = attention_block(p["dec2_att"], x, context)
    x = jnp.concatenate([x, skips.pop()], axis=-1)                  # 640 @ 16x16
    x = residual_block(p["dec3_res"], x, t)
    x = attention_block(p["dec3_att"], x, context)
    return x                                                        # 320 @ 16x16


def diffusion_forward(params, latent, context, time):
    t = time_embedding(params["time_emb"], time)                    # (1, 320) f32
    x = jnp.transpose(latent, (0, 2, 3, 1)).astype(jnp.bfloat16)    # NCHW -> NHWC, bf16
    ctx = context.astype(jnp.bfloat16)
    x = unet_forward(params["unet"], x, ctx, t)
    x = output_layer(params["final"], x)                            # (N, H, W, 4) f32
    return jnp.transpose(x, (0, 3, 1, 2))                           # -> NCHW


# --------------------------------------------------------------------------

if __name__ == "__main__":
    key = jax.random.PRNGKey(0)
    k1, k2, k3 = jax.random.split(key, 3)
    latent = jax.random.normal(k1, (2, 4, 16, 16), jnp.float32)
    context = jax.random.normal(k2, (2, 8, 768), jnp.float32)
    time = jax.random.normal(k3, (1, 320), jnp.float32)

    params = init_diffusion(seed=1234)
    fwd = jax.jit(diffusion_forward)
    out = jax.block_until_ready(fwd(params, latent, context, time))

    assert out.shape == (2, 4, 16, 16), out.shape
    assert bool(jnp.all(jnp.isfinite(out)))
    print("KERNEL_OK")
</pallas_src>

<mosaic_0001>
module attributes {stable_mosaic.version = 11 : i64} {
  func.func @kernel(%arg0: i32, %arg1: i32, %arg2: i32, %arg3: memref<1x320xbf16, #tpu.memory_space<vmem>>, %arg4: memref<320x640xbf16, #tpu.memory_space<vmem>>, %arg5: memref<1x640xf32, #tpu.memory_space<vmem>>, %arg6: memref<1x640xf32, #tpu.memory_space<vmem>>) attributes {dimension_semantics = [#tpu.dimension_semantics<parallel>, #tpu.dimension_semantics<parallel>, #tpu.dimension_semantics<arbitrary>], iteration_bounds = array<i64: 1, 2, 1>, scalar_prefetch = 0 : i64, scratch_operands = 0 : i64, tpu.core_type = #tpu.core_type<tc>, window_params = [{transform_indices = @transform_0, window_bounds = array<i64: 1, 320>}, {transform_indices = @transform_1, window_bounds = array<i64: 320, 640>}, {transform_indices = @transform_2, window_bounds = array<i64: 1, 640>}, {transform_indices = @transform_3, window_bounds = array<i64: 1, 640>}]} {
    %c0 = arith.constant 0 : index
    %c0_0 = arith.constant 0 : index
    %0 = vector.load %arg3[%c0, %c0_0] : memref<1x320xbf16, #tpu.memory_space<vmem>>, vector<1x320xbf16>
    %c0_1 = arith.constant 0 : index
    %c0_2 = arith.constant 0 : index
    %1 = vector.load %arg4[%c0_1, %c0_2] : memref<320x640xbf16, #tpu.memory_space<vmem>>, vector<320x640xbf16>
    %cst = arith.constant dense<0.000000e+00> : vector<1x640xf32>
    %2 = tpu.matmul %0, %1, %cst {dimension_numbers = #tpu.dot_dimension_numbers<[1], [0], [0], [1], [0, 0, 1, 1], [], []>} : vector<1x320xbf16>, vector<320x640xbf16>, vector<1x640xf32> -> vector<1x640xf32>
    %c0_3 = arith.constant 0 : index
    %c0_4 = arith.constant 0 : index
    %3 = vector.load %arg5[%c0_3, %c0_4] : memref<1x640xf32, #tpu.memory_space<vmem>>, vector<1x640xf32>
    %4 = arith.addf %2, %3 : vector<1x640xf32>
    %5 = arith.negf %4 : vector<1x640xf32>
    %6 = math.exp %5 : vector<1x640xf32>
    %cst_5 = arith.constant 1.000000e+00 : f32
    %7 = vector.broadcast %cst_5 : f32 to vector<1x640xf32>
    %8 = arith.addf %7, %6 : vector<1x640xf32>
    %9 = arith.divf %7, %8 : vector<1x640xf32>
    %10 = arith.mulf %4, %9 : vector<1x640xf32>
    %c0_6 = arith.constant 0 : index
    %c0_7 = arith.constant 0 : index
    %11 = vector.load %arg6[%c0_6, %c0_7] : memref<1x640xf32, #tpu.memory_space<vmem>>, vector<1x640xf32>
    tpu.vector_store %arg6[%c0_6, %c0_7], %10 {strides = array<i32>} : memref<1x640xf32, #tpu.memory_space<vmem>>, vector<1x640xf32>,
    return
  }
  func.func @transform_0(%arg0: i32, %arg1: i32, %arg2: i32) -> (i32, i32) {
    %c0_i32 = arith.constant 0 : i32
    return %arg0, %arg2 : i32, i32
  }
  func.func @transform_1(%arg0: i32, %arg1: i32, %arg2: i32) -> (i32, i32) {
    %c0_i32 = arith.constant 0 : i32
    return %arg2, %arg1 : i32, i32
  }
  func.func @transform_2(%arg0: i32, %arg1: i32, %arg2: i32) -> (i32, i32) {
    %c0_i32 = arith.constant 0 : i32
    %c0_i32_0 = arith.constant 0 : i32
    return %c0_i32, %arg1 : i32, i32
  }
  func.func @transform_3(%arg0: i32, %arg1: i32, %arg2: i32) -> (i32, i32) {
    %c0_i32 = arith.constant 0 : i32
    return %arg0, %arg1 : i32, i32
  }
}

</mosaic_0001>

<llo_original>
// kernel: pallas_linear.1
$region0: #{pallas_linear.1}
  #allocation0 [shape = 'u32[]', space=smem, size = 0x4, offset = 0x4, fixed_abs, tag = 'smem constant byte address 0x4 - core index']
  #allocation1 [shape = 'u32[144,128]{1,0:T(1,128)}', space=vmem, size = 0x12000, scoped, tag = 'internal scratch']
  %s0 = inlined_call_operand.vmem [shape: bf16[1,320], index: 0, kind: input, shape index: {}]
  %s1 = inlined_call_operand.hbm [shape: bf16[320,1280], index: 1, kind: input, shape index: {}]
  %s2 = inlined_call_operand.vmem [shape: f32[1,1280], index: 2, kind: input, shape index: {}]
  %s3 = inlined_call_operand.hbm [shape: f32[1,1280], index: 3, kind: output, shape index: {}]
  %s4 = sld [smem:[#allocation0]]
  $region49: #{pallas_linear.1} parent=0
    _
  %s6 = ssub.s32 1, %s4
  %s7 = scalar_select 0, %s6, %s4
  $region1: #{pallas_linear.1} parent=0
    #allocation2 [shape = 'u8[819200]{0}', space=vmem, size = 0xc8000, scoped, tag = 'input window, operand 1']
    #allocation3 [shape = 's32[2]{0}', space=sflag, size = 0x8, scoped, tag = 'scoped memory for pallas_linear.1']
    #allocation4 [shape = 's32[2]{0}', space=sflag, size = 0x8, scoped, tag = 'scoped memory for pallas_linear.1']
    #allocation5 [shape = 'u8[5120]{0}', space=vmem, size = 0x1400, scoped, tag = 'output window, operand 0']
    %8 = vsyncpa [#allocation3], 0
    %s9 = scalar_lea.sflag [#allocation3], 1
    %10 = vsyncpa %s9, 0
    %11 = vsyncpa [#allocation4], 0
    %s12 = scalar_lea.sflag [#allocation4], 1
    %13 = vsyncpa %s12, 0
    loop: start=0, step=1, limit=4
    $region2: #{pallas_linear.1} parent=1 // loop_pre_header
      _
    $region3: #{pallas_linear.1} parent=1 // loop_header
      %s15 = sphi 0, %s19
      %p16 = scmp.ge.s32.totalorder %s15, 4
      %s22 = sphi 0, %s41
      %s23 = sphi 0, %s37
      %s24 = sphi 0, %s33
      %s25 = sphi 0, %s22
      %s26 = sphi 0, %s23
      %s27 = sphi 0, %s24
      %s28 = sphi 0, %s25
      %s29 = sphi 0, %s26
      %s30 = sphi 0, %s27
      %s46 = sphi 0, %s48
      %s49 = sphi 0, %s46
      %s50 = sphi 0, %s49
      %s66 = sphi 0, %s50
      %s74 = sphi 0, %s76
      %s77 = sphi 0, %s74
      %s78 = sphi 0, %s77
      %s94 = sphi 0, %s78
      %s100 = sphi 0, %s102
      %s103 = sphi 0, %s100
      %s104 = sphi 0, %s103
      %s120 = sphi 0, %s104
      %s128 = sphi 0, %s130
      %s131 = sphi 0, %s128
      %s132 = sphi 0, %s131
      %s148 = sphi 0, %s132
    $region4: #{pallas_linear.1} parent=1 // loop_header_branch
      %18 = sbr.rel (%p16) target = $region8
    $region5: #{pallas_linear.1} parent=1 // loop_body
      %s20 = ssub.s32 %s15, 1
      %s21 = ssub.s32 %s15, 2
      %s31 = sadd.s32 1, %s24
      %p32 = scmp.ge.s32.totalorder %s31, 1
      %s33 = scalar_select %p32, 0, %s31
      %s34 = sadd.s32 1, %s23
      %s35 = scalar_select %p32, %s34, %s23
      %p36 = scmp.ge.s32.totalorder %s35, 2
      %s37 = scalar_select %p36, 0, %s35
      %s38 = sadd.s32 1, %s22
      %s39 = scalar_select %p36, %s38, %s22
      %p40 = scmp.ge.s32.totalorder %s39, 1
      %s41 = scalar_select %p40, 0, %s39
      %s42 = ssub.s32 %s22, %s41
      %s43 = ssub.s32 %s24, %s33
      %s44 = sor.u32 %s42, %s43
      %p45 = scmp.eq.s32.totalorder %s44, 0
      %s47 = sadd.s32 %s46, 1
      %s48 = scalar_select %p45, %s46, %s47
      %p51 = pneg %p45
      %p52 = scmp.eq.s32.totalorder %s15, 1
      %p53 = por %p51, %p52
      %p54 = scmp.ne.s32.totalorder %s46, %s49
      %p55 = scmp.eq.s32.totalorder %s15, 0
      %p56 = por %p54, %p55
      %p57 = scmp.ne.s32.totalorder %s46, %s49
      %p58 = scmp.eq.s32.totalorder %s20, 1
      %p59 = por %p57, %p58
      %p60 = scmp.ne.s32.totalorder %s49, %s50
      %p61 = scmp.eq.s32.totalorder %s20, 0
      %p62 = por %p60, %p61
      %p63 = scmp.ne.s32.totalorder %s49, %s50
      %p64 = scmp.eq.s32.totalorder %s21, 1
      %p65 = por %p63, %p64
      %p67 = scmp.ne.s32.totalorder %s50, %s66
      %p68 = scmp.eq.s32.totalorder %s21, 0
      %p69 = por %p67, %p68
      %s70 = ssub.s32 %s24, %s33
      %s71 = ssub.s32 %s23, %s37
      %s72 = sor.u32 %s70, %s71
      %p73 = scmp.eq.s32.totalorder %s72, 0
      %s75 = sadd.s32 %s74, 1
      %s76 = scalar_select %p73, %s74, %s75
      %p79 = pneg %p73
      %p80 = scmp.eq.s32.totalorder %s15, 1
      %p81 = por %p79, %p80
      %p82 = scmp.ne.s32.totalorder %s74, %s77
      %p83 = scmp.eq.s32.totalorder %s15, 0
      %p84 = por %p82, %p83
      %p85 = scmp.ne.s32.totalorder %s74, %s77
      %p86 = scmp.eq.s32.totalorder %s20, 1
      %p87 = por %p85, %p86
      %p88 = scmp.ne.s32.totalorder %s77, %s78
      %p89 = scmp.eq.s32.totalorder %s20, 0
      %p90 = por %p88, %p89
      %p91 = scmp.ne.s32.totalorder %s77, %s78
      %p92 = scmp.eq.s32.totalorder %s21, 1
      %p93 = por %p91, %p92
      %p95 = scmp.ne.s32.totalorder %s78, %s94
      %p96 = scmp.eq.s32.totalorder %s21, 0
      %p97 = por %p95, %p96
      %s98 = ssub.s32 %s23, %s37
      %p99 = scmp.eq.s32.totalorder %s98, 0
      %s101 = sadd.s32 %s100, 1
      %s102 = scalar_select %p99, %s100, %s101
      %p105 = pneg %p99
      %p106 = scmp.eq.s32.totalorder %s15, 1
      %p107 = por %p105, %p106
      %p108 = scmp.ne.s32.totalorder %s100, %s103
      %p109 = scmp.eq.s32.totalorder %s15, 0
      %p110 = por %p108, %p109
      %p111 = scmp.ne.s32.totalorder %s100, %s103
      %p112 = scmp.eq.s32.totalorder %s20, 1
      %p113 = por %p111, %p112
      %p114 = scmp.ne.s32.totalorder %s103, %s104
      %p115 = scmp.eq.s32.totalorder %s20, 0
      %p116 = por %p114, %p115
      %p117 = scmp.ne.s32.totalorder %s103, %s104
      %p118 = scmp.eq.s32.totalorder %s21, 1
      %p119 = por %p117, %p118
      %p121 = scmp.ne.s32.totalorder %s104, %s120
      %p122 = scmp.eq.s32.totalorder %s21, 0
      %p123 = por %p121, %p122
      %s124 = ssub.s32 %s22, %s41
      %s125 = ssub.s32 %s23, %s37
      %s126 = sor.u32 %s124, %s125
      %p127 = scmp.eq.s32.totalorder %s126, 0
      %s129 = sadd.s32 %s128, 1
      %s130 = scalar_select %p127, %s128, %s129
      %p133 = pneg %p127
      %p134 = scmp.eq.s32.totalorder %s15, 1
      %p135 = por %p133, %p134
      %p136 = scmp.ne.s32.totalorder %s128, %s131
      %p137 = scmp.eq.s32.totalorder %s15, 0
      %p138 = por %p136, %p137
      %p139 = scmp.ne.s32.totalorder %s128, %s131
      %p140 = scmp.eq.s32.totalorder %s20, 1
      %p141 = por %p139, %p140
      %p142 = scmp.ne.s32.totalorder %s131, %s132
      %p143 = scmp.eq.s32.totalorder %s20, 0
      %p144 = por %p142, %p143
      %p145 = scmp.ne.s32.totalorder %s131, %s132
      %p146 = scmp.eq.s32.totalorder %s21, 1
      %p147 = por %p145, %p146
      %p149 = scmp.ne.s32.totalorder %s132, %s148
      %p150 = scmp.eq.s32.totalorder %s21, 0
      %p151 = por %p149, %p150
      %p152 = scmp.le.s32.totalorder 1, %s15
      %p153 = scmp.lt.s32.totalorder %s15, 3
      %p154 = pnand %p152, %p153
      %p155 = pneg %p154
      // Predicated region
      $region9: #{pallas_linear.1} parent=5 // pred_check
        _
      $region10: #{pallas_linear.1} parent=5 // pred_check_branch
        %157 = sbr.rel (%p154) target = $region12
      $region11: #{pallas_linear.1} parent=5 // pred_region
        %s158 = ssub.s32 %s15, 1
        // Predicated region
        $region13: #{pallas_linear.1} parent=11 // pred_check
          %p159 = pneg %p62
        $region14: #{pallas_linear.1} parent=11 // pred_check_branch
          %161 = sbr.rel (%p159) target = $region16
        $region15: #{pallas_linear.1} parent=11 // pred_region
          %s162 = smul.u32 3, %s27
          %p163 = scmp.lt.s32.totalorder %s25, 0
          %s164 = scalar_select %p163, %s25, 0
          %p165 = scmp.lt.s32.totalorder %s162, 2
          %s166 = scalar_select %p165, %s162, 2
          %s167 = smul.addr %s164, 3
          %s168 = sadd.s32 %s166, %s167
          %s169 = scalar_lea.vmem %s0, %s168
          %s170 = smul.u32 3, %s27
        $region16: #{pallas_linear.1} parent=11 // pred_fallthru
          _
      $region12: #{pallas_linear.1} parent=5 // pred_fallthru
        _
      %p171 = scmp.lt.s32.totalorder %s15, 2
      // Predicated region
      $region17: #{pallas_linear.1} parent=5 // pred_check
        %p172 = pneg %p171
      $region18: #{pallas_linear.1} parent=5 // pred_check_branch
        %174 = sbr.rel (%p172) target = $region20
      $region19: #{pallas_linear.1} parent=5 // pred_region
        // Predicated region
        $region21: #{pallas_linear.1} parent=19 // pred_check
          %p175 = pneg %p84
        $region22: #{pallas_linear.1} parent=19 // pred_check_branch
          %177 = sbr.rel (%p175) target = $region24
        $region23: #{pallas_linear.1} parent=19 // pred_region
          %s178 = sand.u32 %s74, 1
          %s179 = scalar_lea.sflag [#allocation3], %s178
          %s180 = sand.u32 %s74, 1
          %s181 = smul.addr %s180, 800
          %s182 = scalar_lea.vmem [#allocation2], %s181
          %s183 = smul.u32 40, %s24
          %s184 = smul.u32 5, %s23
          %s186 = ssub.s32 12800, 12800
          %187 = vsyncadd %s179, %s186
          %s188 = smul.addr %s183, 10
          %s189 = sadd.s32 %s184, %s188
          %s190 = smul.addr %s189, 64
          %s191 = scalar_lea.hbm %s1, %s190
          %s192 = sshll.u32 %s182, 4
          %s193 = int_to_ptr.vmem [resolvable:$true] %s192
          %198 = dma.hbm_to_vmem [thread:$0]  %s191, 12800, %s193, %s179, 640, 320, 20
        $region24: #{pallas_linear.1} parent=19 // pred_fallthru
          _
        // Predicated region
        $region25: #{pallas_linear.1} parent=19 // pred_check
          %p199 = pneg %p110
        $region26: #{pallas_linear.1} parent=19 // pred_check_branch
          %201 = sbr.rel (%p199) target = $region28
        $region27: #{pallas_linear.1} parent=19 // pred_region
          %s202 = smul.u32 5, %s23
          %p203 = scmp.lt.s32.totalorder %s202, 9
          %s204 = scalar_select %p203, %s202, 9
          %s205 = scalar_lea.vmem %s2, %s204
          %s206 = smul.u32 5, %s23
        $region28: #{pallas_linear.1} parent=19 // pred_fallthru
          _
      $region20: #{pallas_linear.1} parent=5 // pred_fallthru
        _
      %p207 = scmp.le.s32.totalorder 1, %s15
      %p208 = scmp.lt.s32.totalorder %s15, 3
      %p209 = pnand %p207, %p208
      %p210 = pneg %p209
      // Predicated region
      $region29: #{pallas_linear.1} parent=5 // pred_check
        _
      $region30: #{pallas_linear.1} parent=5 // pred_check_branch
        %212 = sbr.rel (%p209) target = $region32
      $region31: #{pallas_linear.1} parent=5 // pred_region
        %s213 = ssub.s32 %s15, 1
        %s214 = sand.u32 %s77, 1
        %s215 = scalar_lea.sflag [#allocation3], %s214
        %s216 = sand.u32 %s77, 1
        %s217 = smul.addr %s216, 800
        %s218 = scalar_lea.vmem [#allocation2], %s217
        // Predicated region
        $region33: #{pallas_linear.1} parent=31 // pred_check
          %p219 = pneg %p90
        $region34: #{pallas_linear.1} parent=31 // pred_check_branch
          %221 = sbr.rel (%p219) target = $region36
        $region35: #{pallas_linear.1} parent=31 // pred_region
          %222 = dma.done %s215, 12800
        $region36: #{pallas_linear.1} parent=31 // pred_fallthru
          _
        %s223 = smul.u32 3, %s27
        %p224 = scmp.lt.s32.totalorder %s25, 0
        %s225 = scalar_select %p224, %s25, 0
        %p226 = scmp.lt.s32.totalorder %s223, 2
        %s227 = scalar_select %p226, %s223, 2
        %s228 = smul.addr %s225, 3
        %s229 = sadd.s32 %s227, %s228
        %s230 = scalar_lea.vmem %s0, %s229
        %p231 = pneg %p62
        %p232 = pneg %p59
        %s233 = sand.u32 %s77, 1
        %s234 = scalar_lea.sflag [#allocation3], %s233
        %s235 = sand.u32 %s77, 1
        %s236 = smul.addr %s235, 800
        %s237 = scalar_lea.vmem [#allocation2], %s236
        %p238 = pneg %p90
        %p239 = pneg %p87
        %s240 = smul.u32 5, %s26
        %p241 = scmp.lt.s32.totalorder %s240, 9
        %s242 = scalar_select %p241, %s240, 9
        %s243 = scalar_lea.vmem %s2, %s242
        %p244 = pneg %p116
        %p245 = pneg %p113
        %p246 = pneg %p144
        %p247 = pneg %p141
        %s248 = sand.u32 %s131, 1
        %s249 = scalar_lea.sflag [#allocation4], %s248
        %s250 = sand.u32 %s131, 1
        %s251 = smul.addr %s250, 5
        %s252 = scalar_lea.vmem [#allocation5], %s251
        %s253 = smul.u32 3, %s27
        %p254 = scmp.lt.s32.totalorder %s25, 0
        %s255 = scalar_select %p254, %s25, 0
        %p256 = scmp.lt.s32.totalorder %s253, 2
        %s257 = scalar_select %p256, %s253, 2
        %s258 = smul.addr %s255, 3
        %s259 = sadd.s32 %s257, %s258
        %s260 = scalar_lea.vmem %s0, %s259
        %s261 = smul.u32 3, %s27
        %s262 = smul.u32 40, %s27
        %s263 = smul.u32 5, %s26
        %s264 = smul.u32 5, %s26
        %p265 = scmp.lt.s32.totalorder %s264, 9
        %s266 = scalar_select %p265, %s264, 9
        %s267 = scalar_lea.vmem %s2, %s266
        %s268 = smul.u32 5, %s26
        %s269 = smul.u32 5, %s26
        %v271 = vld [vmem:[%s260] sm:$0x7]
        %v272 = vld [vmem:[%s218] sm:$0xff]
        %v273 = vld [vmem:[%s218 + $0x8] sm:$0xff]
        %v274 = vld [vmem:[%s218 + $0x10] sm:$0xf]
        %v275 = vld [vmem:[%s218 + $0x14] sm:$0xff]
        %v276 = vld [vmem:[%s218 + $0x1c] sm:$0xff]
        %v277 = vld [vmem:[%s218 + $0x24] sm:$0xf]
        %v278 = vld [vmem:[%s218 + $0x28] sm:$0xff]
        %v279 = vld [vmem:[%s218 + $0x30] sm:$0xff]
        %v280 = vld [vmem:[%s218 + $0x38] sm:$0xf]
        %v281 = vld [vmem:[%s218 + $0x3c] sm:$0xff]
        %v282 = vld [vmem:[%s218 + $0x44] sm:$0xff]
        %v283 = vld [vmem:[%s218 + $0x4c] sm:$0xf]
        %v284 = vld [vmem:[%s218 + $0x50] sm:$0xff]
        %v285 = vld [vmem:[%s218 + $0x58] sm:$0xff]
        %v286 = vld [vmem:[%s218 + $0x60] sm:$0xf]
        %v287 = vld [vmem:[%s218 + $0x64] sm:$0xff]
        %v288 = vld [vmem:[%s218 + $0x6c] sm:$0xff]
        %v289 = vld [vmem:[%s218 + $0x74] sm:$0xf]
        %v290 = vld [vmem:[%s218 + $0x78] sm:$0xff]
        %v291 = vld [vmem:[%s218 + $0x80] sm:$0xff]
        %v292 = vld [vmem:[%s218 + $0x88] sm:$0xf]
        %v293 = vld [vmem:[%s218 + $0x8c] sm:$0xff]
        %v294 = vld [vmem:[%s218 + $0x94] sm:$0xff]
        %v295 = vld [vmem:[%s218 + $0x9c] sm:$0xf]
        %v296 = vld [vmem:[%s218 + $0xa0] sm:$0xff]
        %v297 = vld [vmem:[%s218 + $0xa8] sm:$0xff]
        %v298 = vld [vmem:[%s218 + $0xb0] sm:$0xf]
        %v299 = vld [vmem:[%s218 + $0xb4] sm:$0xff]
        %v300 = vld [vmem:[%s218 + $0xbc] sm:$0xff]
        %v301 = vld [vmem:[%s218 + $0xc4] sm:$0xf]
        %v302 = vld [vmem:[%s218 + $0xc8] sm:$0xff]
        %v303 = vld [vmem:[%s218 + $0xd0] sm:$0xff]
        %v304 = vld [vmem:[%s218 + $0xd8] sm:$0xf]
        %v305 = vld [vmem:[%s218 + $0xdc] sm:$0xff]
        %v306 = vld [vmem:[%s218 + $0xe4] sm:$0xff]
        %v307 = vld [vmem:[%s218 + $0xec] sm:$0xf]
        %v308 = vld [vmem:[%s218 + $0xf0] sm:$0xff]
        %v309 = vld [vmem:[%s218 + $0xf8] sm:$0xff]
        %v310 = vld [vmem:[%s218 + $0x100] sm:$0xf]
        %v311 = vld [vmem:[%s218 + $0x104] sm:$0xff]
        %v312 = vld [vmem:[%s218 + $0x10c] sm:$0xff]
        %v313 = vld [vmem:[%s218 + $0x114] sm:$0xf]
        %v314 = vld [vmem:[%s218 + $0x118] sm:$0xff]
        %v315 = vld [vmem:[%s218 + $0x120] sm:$0xff]
        %v316 = vld [vmem:[%s218 + $0x128] sm:$0xf]
        %v317 = vld [vmem:[%s218 + $0x12c] sm:$0xff]
        %v318 = vld [vmem:[%s218 + $0x134] sm:$0xff]
        %v319 = vld [vmem:[%s218 + $0x13c] sm:$0xf]
        %v320 = vld [vmem:[%s218 + $0x140] sm:$0xff]
        %v321 = vld [vmem:[%s218 + $0x148] sm:$0xff]
        %v322 = vld [vmem:[%s218 + $0x150] sm:$0xf]
        %v323 = vld [vmem:[%s218 + $0x154] sm:$0xff]
        %v324 = vld [vmem:[%s218 + $0x15c] sm:$0xff]
        %v325 = vld [vmem:[%s218 + $0x164] sm:$0xf]
        %v326 = vld [vmem:[%s218 + $0x168] sm:$0xff]
        %v327 = vld [vmem:[%s218 + $0x170] sm:$0xff]
        %v328 = vld [vmem:[%s218 + $0x178] sm:$0xf]
        %v329 = vld [vmem:[%s218 + $0x17c] sm:$0xff]
        %v330 = vld [vmem:[%s218 + $0x184] sm:$0xff]
        %v331 = vld [vmem:[%s218 + $0x18c] sm:$0xf]
        %v332 = vld [vmem:[%s218 + $0x190] sm:$0xff]
        %v333 = vld [vmem:[%s218 + $0x198] sm:$0xff]
        %v334 = vld [vmem:[%s218 + $0x1a0] sm:$0xf]
        %v335 = vld [vmem:[%s218 + $0x1a4] sm:$0xff]
        %v336 = vld [vmem:[%s218 + $0x1ac] sm:$0xff]
        %v337 = vld [vmem:[%s218 + $0x1b4] sm:$0xf]
        %v338 = vld [vmem:[%s218 + $0x1b8] sm:$0xff]
        %v339 = vld [vmem:[%s218 + $0x1c0] sm:$0xff]
        %v340 = vld [vmem:[%s218 + $0x1c8] sm:$0xf]
        %v341 = vld [vmem:[%s218 + $0x1cc] sm:$0xff]
        %v342 = vld [vmem:[%s218 + $0x1d4] sm:$0xff]
        %v343 = vld [vmem:[%s218 + $0x1dc] sm:$0xf]
        %v344 = vld [vmem:[%s218 + $0x1e0] sm:$0xff]
        %v345 = vld [vmem:[%s218 + $0x1e8] sm:$0xff]
        %v346 = vld [vmem:[%s218 + $0x1f0] sm:$0xf]
        %v347 = vld [vmem:[%s218 + $0x1f4] sm:$0xff]
        %v348 = vld [vmem:[%s218 + $0x1fc] sm:$0xff]
        %v349 = vld [vmem:[%s218 + $0x204] sm:$0xf]
        %v350 = vld [vmem:[%s218 + $0x208] sm:$0xff]
        %v351 = vld [vmem:[%s218 + $0x210] sm:$0xff]
        %v352 = vld [vmem:[%s218 + $0x218] sm:$0xf]
        %v353 = vld [vmem:[%s218 + $0x21c] sm:$0xff]
        %v354 = vld [vmem:[%s218 + $0x224] sm:$0xff]
        %v355 = vld [vmem:[%s218 + $0x22c] sm:$0xf]
        %v356 = vld [vmem:[%s218 + $0x230] sm:$0xff]
        %v357 = vld [vmem:[%s218 + $0x238] sm:$0xff]
        %v358 = vld [vmem:[%s218 + $0x240] sm:$0xf]
        %v359 = vld [vmem:[%s218 + $0x244] sm:$0xff]
        %v360 = vld [vmem:[%s218 + $0x24c] sm:$0xff]
        %v361 = vld [vmem:[%s218 + $0x254] sm:$0xf]
        %v362 = vld [vmem:[%s218 + $0x258] sm:$0xff]
        %v363 = vld [vmem:[%s218 + $0x260] sm:$0xff]
        %v364 = vld [vmem:[%s218 + $0x268] sm:$0xf]
        %v365 = vld [vmem:[%s218 + $0x26c] sm:$0xff]
        %v366 = vld [vmem:[%s218 + $0x274] sm:$0xff]
        %v367 = vld [vmem:[%s218 + $0x27c] sm:$0xf]
        %v368 = vld [vmem:[%s218 + $0x280] sm:$0xff]
        %v369 = vld [vmem:[%s218 + $0x288] sm:$0xff]
        %v370 = vld [vmem:[%s218 + $0x290] sm:$0xf]
        %v371 = vld [vmem:[%s218 + $0x294] sm:$0xff]
        %v372 = vld [vmem:[%s218 + $0x29c] sm:$0xff]
        %v373 = vld [vmem:[%s218 + $0x2a4] sm:$0xf]
        %v374 = vld [vmem:[%s218 + $0x2a8] sm:$0xff]
        %v375 = vld [vmem:[%s218 + $0x2b0] sm:$0xff]
        %v376 = vld [vmem:[%s218 + $0x2b8] sm:$0xf]
        %v377 = vld [vmem:[%s218 + $0x2bc] sm:$0xff]
        %v378 = vld [vmem:[%s218 + $0x2c4] sm:$0xff]
        %v379 = vld [vmem:[%s218 + $0x2cc] sm:$0xf]
        %v380 = vld [vmem:[%s218 + $0x2d0] sm:$0xff]
        %v381 = vld [vmem:[%s218 + $0x2d8] sm:$0xff]
        %v382 = vld [vmem:[%s218 + $0x2e0] sm:$0xf]
        %v383 = vld [vmem:[%s218 + $0x2e4] sm:$0xff]
        %v384 = vld [vmem:[%s218 + $0x2ec] sm:$0xff]
        %v385 = vld [vmem:[%s218 + $0x2f4] sm:$0xf]
        %v386 = vld [vmem:[%s218 + $0x2f8] sm:$0xff]
        %v387 = vld [vmem:[%s218 + $0x300] sm:$0xff]
        %v388 = vld [vmem:[%s218 + $0x308] sm:$0xf]
        %v389 = vld [vmem:[%s218 + $0x30c] sm:$0xff]
        %v390 = vld [vmem:[%s218 + $0x314] sm:$0xff]
        %v391 = vld [vmem:[%s218 + $0x31c] sm:$0xf]
        %v392 = vld [vmem:[%s267] sm:$0x1f]
        %v395 = vunpack.c.l.s4 1966171168
        %v396 = vunpack.c.0.s8 %v395
        %v397 = vlaneseq
        %v398 = vshrl.u32 %v397, 7
        %v399 = vsub.s32 %v396, %v398
        %v400 = vrot.slane %v271, %v399
        %v401 = vcombine.high %v400, %v400
        %v403 = vunpack.c.l.s4 1966171168
        %v404 = vunpack.c.0.s8 %v403
        %v405 = vlaneseq
        %v406 = vshrl.u32 %v405, 7
        %v407 = vsub.s32 %v404, %v406
        %v408 = vrot.slane %v400, %v407
        %v410 = vunpack.c.l.s4 1966171168
        %v411 = vunpack.c.0.s8 %v410
        %v412 = vlaneseq
        %v413 = vshrl.u32 %v412, 7
        %v414 = vsub.s32 %v411, %v413
        %v415 = vrot.slane %v401, %v414
        %v416 = vcombine.high %v408, %v408
        %v539 = vunpack.c.l.b16 %v272
        %v540 = vunpack.c.h.b16 %v272
        %v541 = vunpack.c.l.b16 %v273
        %v542 = vunpack.c.h.b16 %v273
        %v543 = vunpack.c.l.b16 %v274
        %v544 = vunpack.c.l.b16 %v275
        %v545 = vunpack.c.h.b16 %v275
        %v546 = vunpack.c.l.b16 %v276
        %v547 = vunpack.c.h.b16 %v276
        %v548 = vunpack.c.l.b16 %v277
        %v549 = vunpack.c.l.b16 %v278
        %v550 = vunpack.c.h.b16 %v278
        %v551 = vunpack.c.l.b16 %v279
        %v552 = vunpack.c.h.b16 %v279
        %v553 = vunpack.c.l.b16 %v280
        %v554 = vunpack.c.l.b16 %v281
        %v555 = vunpack.c.h.b16 %v281
        %v556 = vunpack.c.l.b16 %v282
        %v557 = vunpack.c.h.b16 %v282
        %v558 = vunpack.c.l.b16 %v283
        %v559 = vunpack.c.l.b16 %v284
        %v560 = vunpack.c.h.b16 %v284
        %v561 = vunpack.c.l.b16 %v285
        %v562 = vunpack.c.h.b16 %v285
        %v563 = vunpack.c.l.b16 %v286
        %v564 = vunpack.c.l.b16 %v287
        %v565 = vunpack.c.h.b16 %v287
        %v566 = vunpack.c.l.b16 %v288
        %v567 = vunpack.c.h.b16 %v288
        %v568 = vunpack.c.l.b16 %v289
        %v569 = vunpack.c.l.b16 %v290
        %v570 = vunpack.c.h.b16 %v290
        %v571 = vunpack.c.l.b16 %v291
        %v572 = vunpack.c.h.b16 %v291
        %v573 = vunpack.c.l.b16 %v292
        %v574 = vunpack.c.l.b16 %v293
        %v575 = vunpack.c.h.b16 %v293
        %v576 = vunpack.c.l.b16 %v294
        %v577 = vunpack.c.h.b16 %v294
        %v578 = vunpack.c.l.b16 %v295
        %v579 = vunpack.c.l.b16 %v296
        %v580 = vunpack.c.h.b16 %v296
        %v581 = vunpack.c.l.b16 %v297
        %v582 = vunpack.c.h.b16 %v297
        %v583 = vunpack.c.l.b16 %v298
        %v584 = vunpack.c.l.b16 %v299
        %v585 = vunpack.c.h.b16 %v299
        %v586 = vunpack.c.l.b16 %v300
        %v587 = vunpack.c.h.b16 %v300
        %v588 = vunpack.c.l.b16 %v301
        %v589 = vunpack.c.l.b16 %v302
        %v590 = vunpack.c.h.b16 %v302
        %v591 = vunpack.c.l.b16 %v303
        %v592 = vunpack.c.h.b16 %v303
        %v593 = vunpack.c.l.b16 %v304
        %v594 = vunpack.c.l.b16 %v305
        %v595 = vunpack.c.h.b16 %v305
        %v596 = vunpack.c.l.b16 %v306
        %v597 = vunpack.c.h.b16 %v306
        %v598 = vunpack.c.l.b16 %v307
        %v599 = vunpack.c.l.b16 %v308
        %v600 = vunpack.c.h.b16 %v308
        %v601 = vunpack.c.l.b16 %v309
        %v602 = vunpack.c.h.b16 %v309
        %v603 = vunpack.c.l.b16 %v310
        %v604 = vunpack.c.l.b16 %v311
        %v605 = vunpack.c.h.b16 %v311
        %v606 = vunpack.c.l.b16 %v312
        %v607 = vunpack.c.h.b16 %v312
        %v608 = vunpack.c.l.b16 %v313
        %v609 = vunpack.c.l.b16 %v314
        %v610 = vunpack.c.h.b16 %v314
        %v611 = vunpack.c.l.b16 %v315
        %v612 = vunpack.c.h.b16 %v315
        %v613 = vunpack.c.l.b16 %v316
        %v614 = vunpack.c.l.b16 %v317
        %v615 = vunpack.c.h.b16 %v317
        %v616 = vunpack.c.l.b16 %v318
        %v617 = vunpack.c.h.b16 %v318
        %v618 = vunpack.c.l.b16 %v319
        %v619 = vunpack.c.l.b16 %v320
        %v620 = vunpack.c.h.b16 %v320
        %v621 = vunpack.c.l.b16 %v321
        %v622 = vunpack.c.h.b16 %v321
        %v623 = vunpack.c.l.b16 %v322
        %v624 = vunpack.c.l.b16 %v323
        %v625 = vunpack.c.h.b16 %v323
        %v626 = vunpack.c.l.b16 %v324
        %v627 = vunpack.c.h.b16 %v324
        %v628 = vunpack.c.l.b16 %v325
        %v629 = vunpack.c.l.b16 %v326
        %v630 = vunpack.c.h.b16 %v326
        %v631 = vunpack.c.l.b16 %v327
        %v632 = vunpack.c.h.b16 %v327
        %v633 = vunpack.c.l.b16 %v328
        %v634 = vunpack.c.l.b16 %v329
        %v635 = vunpack.c.h.b16 %v329
        %v636 = vunpack.c.l.b16 %v330
        %v637 = vunpack.c.h.b16 %v330
        %v638 = vunpack.c.l.b16 %v331
        %v639 = vunpack.c.l.b16 %v332
        %v640 = vunpack.c.h.b16 %v332
        %v641 = vunpack.c.l.b16 %v333
        %v642 = vunpack.c.h.b16 %v333
        %v643 = vunpack.c.l.b16 %v334
        %v644 = vunpack.c.l.b16 %v335
        %v645 = vunpack.c.h.b16 %v335
        %v646 = vunpack.c.l.b16 %v336
        %v647 = vunpack.c.h.b16 %v336
        %v648 = vunpack.c.l.b16 %v337
        %v649 = vunpack.c.l.b16 %v338
        %v650 = vunpack.c.h.b16 %v338
        %v651 = vunpack.c.l.b16 %v339
        %v652 = vunpack.c.h.b16 %v339
        %v653 = vunpack.c.l.b16 %v340
        %v654 = vunpack.c.l.b16 %v341
        %v655 = vunpack.c.h.b16 %v341
        %v656 = vunpack.c.l.b16 %v342
        %v657 = vunpack.c.h.b16 %v342
        %v658 = vunpack.c.l.b16 %v343
        %v659 = vunpack.c.l.b16 %v344
        %v660 = vunpack.c.h.b16 %v344
        %v661 = vunpack.c.l.b16 %v345
        %v662 = vunpack.c.h.b16 %v345
        %v663 = vunpack.c.l.b16 %v346
        %v664 = vunpack.c.l.b16 %v347
        %v665 = vunpack.c.h.b16 %v347
        %v666 = vunpack.c.l.b16 %v348
        %v667 = vunpack.c.h.b16 %v348
        %v668 = vunpack.c.l.b16 %v349
        %v669 = vunpack.c.l.b16 %v350
        %v670 = vunpack.c.h.b16 %v350
        %v671 = vunpack.c.l.b16 %v351
        %v672 = vunpack.c.h.b16 %v351
        %v673 = vunpack.c.l.b16 %v352
        %v674 = vunpack.c.l.b16 %v353
        %v675 = vunpack.c.h.b16 %v353
        %v676 = vunpack.c.l.b16 %v354
        %v677 = vunpack.c.h.b16 %v354
        %v678 = vunpack.c.l.b16 %v355
        %v679 = vunpack.c.l.b16 %v356
        %v680 = vunpack.c.h.b16 %v356
        %v681 = vunpack.c.l.b16 %v357
        %v682 = vunpack.c.h.b16 %v357
        %v683 = vunpack.c.l.b16 %v358
        %v684 = vunpack.c.l.b16 %v359
        %v685 = vunpack.c.h.b16 %v359
        %v686 = vunpack.c.l.b16 %v360
        %v687 = vunpack.c.h.b16 %v360
        %v688 = vunpack.c.l.b16 %v361
        %v689 = vunpack.c.l.b16 %v362
        %v690 = vunpack.c.h.b16 %v362
        %v691 = vunpack.c.l.b16 %v363
        %v692 = vunpack.c.h.b16 %v363
        %v693 = vunpack.c.l.b16 %v364
        %v694 = vunpack.c.l.b16 %v365
        %v695 = vunpack.c.h.b16 %v365
        %v696 = vunpack.c.l.b16 %v366
        %v697 = vunpack.c.h.b16 %v366
        %v698 = vunpack.c.l.b16 %v367
        %v699 = vunpack.c.l.b16 %v368
        %v700 = vunpack.c.h.b16 %v368
        %v701 = vunpack.c.l.b16 %v369
        %v702 = vunpack.c.h.b16 %v369
        %v703 = vunpack.c.l.b16 %v370
        %v704 = vunpack.c.l.b16 %v371
        %v705 = vunpack.c.h.b16 %v371
        %v706 = vunpack.c.l.b16 %v372
        %v707 = vunpack.c.h.b16 %v372
        %v708 = vunpack.c.l.b16 %v373
        %v709 = vunpack.c.l.b16 %v374
        %v710 = vunpack.c.h.b16 %v374
        %v711 = vunpack.c.l.b16 %v375
        %v712 = vunpack.c.h.b16 %v375
        %v713 = vunpack.c.l.b16 %v376
        %v714 = vunpack.c.l.b16 %v377
        %v715 = vunpack.c.h.b16 %v377
        %v716 = vunpack.c.l.b16 %v378
        %v717 = vunpack.c.h.b16 %v378
        %v718 = vunpack.c.l.b16 %v379
        %v719 = vunpack.c.l.b16 %v380
        %v720 = vunpack.c.h.b16 %v380
        %v721 = vunpack.c.l.b16 %v381
        %v722 = vunpack.c.h.b16 %v381
        %v723 = vunpack.c.l.b16 %v382
        %v724 = vunpack.c.l.b16 %v383
        %v725 = vunpack.c.h.b16 %v383
        %v726 = vunpack.c.l.b16 %v384
        %v727 = vunpack.c.h.b16 %v384
        %v728 = vunpack.c.l.b16 %v385
        %v729 = vunpack.c.l.b16 %v386
        %v730 = vunpack.c.h.b16 %v386
        %v731 = vunpack.c.l.b16 %v387
        %v732 = vunpack.c.h.b16 %v387
        %v733 = vunpack.c.l.b16 %v388
        %v734 = vunpack.c.l.b16 %v389
        %v735 = vunpack.c.h.b16 %v389
        %v736 = vunpack.c.l.b16 %v390
        %v737 = vunpack.c.h.b16 %v390
        %v738 = vunpack.c.l.b16 %v391
        %v739 = vpack.c.b16 %v544, %v539
        %v740 = vpack.c.b16 %v545, %v540
        %v741 = vpack.c.b16 %v546, %v541
        %v742 = vpack.c.b16 %v547, %v542
        %v743 = vpack.c.b16 %v548, %v543
        %v744 = vpack.c.b16 %v554, %v549
        %v745 = vpack.c.b16 %v555, %v550
        %v746 = vpack.c.b16 %v556, %v551
        %v747 = vpack.c.b16 %v557, %v552
        %v748 = vpack.c.b16 %v558, %v553
        %v749 = vpack.c.b16 %v564, %v559
        %v750 = vpack.c.b16 %v565, %v560
        %v751 = vpack.c.b16 %v566, %v561
        %v752 = vpack.c.b16 %v567, %v562
        %v753 = vpack.c.b16 %v568, %v563
        %v754 = vpack.c.b16 %v574, %v569
        %v755 = vpack.c.b16 %v575, %v570
        %v756 = vpack.c.b16 %v576, %v571
        %v757 = vpack.c.b16 %v577, %v572
        %v758 = vpack.c.b16 %v578, %v573
        %v759 = vpack.c.b16 %v584, %v579
        %v760 = vpack.c.b16 %v585, %v580
        %v761 = vpack.c.b16 %v586, %v581
        %v762 = vpack.c.b16 %v587, %v582
        %v763 = vpack.c.b16 %v588, %v583
        %v764 = vpack.c.b16 %v594, %v589
        %v765 = vpack.c.b16 %v595, %v590
        %v766 = vpack.c.b16 %v596, %v591
        %v767 = vpack.c.b16 %v597, %v592
        %v768 = vpack.c.b16 %v598, %v593
        %v769 = vpack.c.b16 %v604, %v599
        %v770 = vpack.c.b16 %v605, %v600
        %v771 = vpack.c.b16 %v606, %v601
        %v772 = vpack.c.b16 %v607, %v602
        %v773 = vpack.c.b16 %v608, %v603
        %v774 = vpack.c.b16 %v614, %v609
        %v775 = vpack.c.b16 %v615, %v610
        %v776 = vpack.c.b16 %v616, %v611
        %v777 = vpack.c.b16 %v617, %v612
        %v778 = vpack.c.b16 %v618, %v613
        %v779 = vpack.c.b16 %v624, %v619
        %v780 = vpack.c.b16 %v625, %v620
        %v781 = vpack.c.b16 %v626, %v621
        %v782 = vpack.c.b16 %v627, %v622
        %v783 = vpack.c.b16 %v628, %v623
        %v784 = vpack.c.b16 %v634, %v629
        %v785 = vpack.c.b16 %v635, %v630
        %v786 = vpack.c.b16 %v636, %v631
        %v787 = vpack.c.b16 %v637, %v632
        %v788 = vpack.c.b16 %v638, %v633
        %v789 = vpack.c.b16 %v644, %v639
        %v790 = vpack.c.b16 %v645, %v640
        %v791 = vpack.c.b16 %v646, %v641
        %v792 = vpack.c.b16 %v647, %v642
        %v793 = vpack.c.b16 %v648, %v643
        %v794 = vpack.c.b16 %v654, %v649
        %v795 = vpack.c.b16 %v655, %v650
        %v796 = vpack.c.b16 %v656, %v651
        %v797 = vpack.c.b16 %v657, %v652
        %v798 = vpack.c.b16 %v658, %v653
        %v799 = vpack.c.b16 %v664, %v659
        %v800 = vpack.c.b16 %v665, %v660
        %v801 = vpack.c.b16 %v666, %v661
        %v802 = vpack.c.b16 %v667, %v662
        %v803 = vpack.c.b16 %v668, %v663
        %v804 = vpack.c.b16 %v674, %v669
        %v805 = vpack.c.b16 %v675, %v670
        %v806 = vpack.c.b16 %v676, %v671
        %v807 = vpack.c.b16 %v677, %v672
        %v808 = vpack.c.b16 %v678, %v673
        %v809 = vpack.c.b16 %v684, %v679
        %v810 = vpack.c.b16 %v685, %v680
        %v811 = vpack.c.b16 %v686, %v681
        %v812 = vpack.c.b16 %v687, %v682
        %v813 = vpack.c.b16 %v688, %v683
        %v814 = vpack.c.b16 %v694, %v689
        %v815 = vpack.c.b16 %v695, %v690
        %v816 = vpack.c.b16 %v696, %v691
        %v817 = vpack.c.b16 %v697, %v692
        %v818 = vpack.c.b16 %v698, %v693
        %v819 = vpack.c.b16 %v704, %v699
        %v820 = vpack.c.b16 %v705, %v700
        %v821 = vpack.c.b16 %v706, %v701
        %v822 = vpack.c.b16 %v707, %v702
        %v823 = vpack.c.b16 %v708, %v703
        %v824 = vpack.c.b16 %v714, %v709
        %v825 = vpack.c.b16 %v715, %v710
        %v826 = vpack.c.b16 %v716, %v711
        %v827 = vpack.c.b16 %v717, %v712
        %v828 = vpack.c.b16 %v718, %v713
        %v829 = vpack.c.b16 %v724, %v719
        %v830 = vpack.c.b16 %v725, %v720
        %v831 = vpack.c.b16 %v726, %v721
        %v832 = vpack.c.b16 %v727, %v722
        %v833 = vpack.c.b16 %v728, %v723
        %v834 = vpack.c.b16 %v734, %v729
        %v835 = vpack.c.b16 %v735, %v730
        %v836 = vpack.c.b16 %v736, %v731
        %v837 = vpack.c.b16 %v737, %v732
        %v838 = vpack.c.b16 %v738, %v733
        %v940 = vlaneseq
        %v941 = vshrl.u32 %v940, 7
        %v942 = vsub.s32 0, %v941
        %v943 = vrot.slane %v392, %v942
        %v944 = vlaneseq
        %v945 = vshrl.u32 %v944, 7
        %v946 = vsub.s32 1, %v945
        %v947 = vrot.slane %v392, %v946
        %v948 = vlaneseq
        %v949 = vshrl.u32 %v948, 7
        %v950 = vsub.s32 2, %v949
        %v951 = vrot.slane %v392, %v950
        %v952 = vlaneseq
        %v953 = vshrl.u32 %v952, 7
        %v954 = vsub.s32 3, %v953
        %v955 = vrot.slane %v392, %v954
        %v956 = vlaneseq
        %v957 = vshrl.u32 %v956, 7
        %v958 = vsub.s32 4, %v957
        %v959 = vrot.slane %v392, %v958
        %vm965 = vcmask 523264
        %v967 = vsel %vm965, %v416, 0
        %969 = vmatprep.subr.bf16.mxu0 %v740
        %970 = vmatpush1.bf16.msra.mxu0 %v739
        %971 = vmatprep.subr.bf16.mxu0 %v745
        %972 = vmatpush1.bf16.msra.mxu0 %v744
        %973 = vmatprep.subr.bf16.mxu0 %v750
        %974 = vmatpush1.bf16.msra.mxu0 %v749
        %975 = vmatprep.subr.bf16.mxu0 %v755
        %976 = vmatpush1.bf16.msra.mxu0 %v754
        %977 = vmatprep.subr.bf16.mxu0 %v760
        %978 = vmatpush1.bf16.msra.mxu0 %v759
        %979 = vmatprep.subr.bf16.mxu0 %v765
        %980 = vmatpush1.bf16.msra.mxu0 %v764
        %981 = vmatprep.subr.bf16.mxu0 %v770
        %982 = vmatpush1.bf16.msra.mxu0 %v769
        %983 = vmatprep.subr.bf16.mxu0 %v775
        %984 = vmatpush1.bf16.msra.mxu0 %v774
        %985 = vmatprep.subr.bf16.mxu0 %v780
        %986 = vmatpush1.bf16.msra.mxu0 %v779
        %987 = vmatprep.subr.bf16.mxu0 %v785
        %988 = vmatpush1.bf16.msra.mxu0 %v784
        %989 = vmatprep.subr.bf16.mxu0 %v790
        %990 = vmatpush1.bf16.msra.mxu0 %v789
        %991 = vmatprep.subr.bf16.mxu0 %v795
        %992 = vmatpush1.bf16.msra.mxu0 %v794
        %993 = vmatprep.subr.bf16.mxu0 %v800
        %994 = vmatpush1.bf16.msra.mxu0 %v799
        %995 = vmatprep.subr.bf16.mxu0 %v805
        %996 = vmatpush1.bf16.msra.mxu0 %v804
        %997 = vmatprep.subr.bf16.mxu0 %v810
        %998 = vmatpush1.bf16.msra.mxu0 %v809
        %999 = vmatprep.subr.bf16.mxu0 %v815
        %1000 = vmatpush1.bf16.msra.mxu0 %v814
        %1001 = vmatprep.mubr.bf16.mxu0 %v415
        %1002 = vmatmul.mubr.bf16.gmra.mrb[0].mxu0 %v408
        %v1003 = vpop.f32.mrb[0].mxu0
        %v1004 = vadd.f32 %v943, %v1003
        %v1005 = vpop.f32.mrb[0].mxu0
        %v1006 = vadd.f32 %v947, %v1005
        %v1007 = vpop.f32.mrb[0].mxu0
        %v1008 = vpop.f32.mrb[0].mxu0
        %1009 = vdwg.mxu0
        %1010 = vmatprep.subr.bf16.mxu0 %v820
        %1011 = vmatpush1.bf16.msra.mxu0 %v819
        %1012 = vmatprep.subr.bf16.mxu0 %v825
        %1013 = vmatpush1.bf16.msra.mxu0 %v824
        %1014 = vmatprep.subr.bf16.mxu0 %v830
        %1015 = vmatpush1.bf16.msra.mxu0 %v829
        %1016 = vmatprep.subr.bf16.mxu0 %v835
        %1017 = vmatpush1.bf16.msra.mxu0 %v834
        %1018 = vmatprep.subr.bf16.mxu0 0
        %1019 = vmatpush1.bf16.msra.mxu0 0
        %1020 = vmatprep.subr.bf16.mxu0 0
        %1021 = vmatpush1.bf16.msra.mxu0 0
        %1022 = vmatprep.subr.bf16.mxu0 0
        %1023 = vmatpush1.bf16.msra.mxu0 0
        %1024 = vmatprep.subr.bf16.mxu0 0
        %1025 = vmatpush1.bf16.msra.mxu0 0
        %1026 = vmatprep.subr.bf16.mxu0 0
        %1027 = vmatpush1.bf16.msra.mxu0 0
        %1028 = vmatprep.subr.bf16.mxu0 0
        %1029 = vmatpush1.bf16.msra.mxu0 0
        %1030 = vmatprep.subr.bf16.mxu0 0
        %1031 = vmatpush1.bf16.msra.mxu0 0
        %1032 = vmatprep.subr.bf16.mxu0 0
        %1033 = vmatpush1.bf16.msra.mxu0 0
        %1034 = vmatprep.subr.bf16.mxu0 0
        %1035 = vmatpush1.bf16.msra.mxu0 0
        %1036 = vmatprep.subr.bf16.mxu0 0
        %1037 = vmatpush1.bf16.msra.mxu0 0
        %1038 = vmatprep.subr.bf16.mxu0 0
        %1039 = vmatpush1.bf16.msra.mxu0 0
        %1040 = vmatprep.subr.bf16.mxu0 0
        %1041 = vmatpush1.bf16.msra.mxu0 0
        %1042 = vmatprep.mubr.bf16.mxu0 0
        %1043 = vmatmul.mubr.bf16.gmra.mrb[0].mxu0 %v967
        %v1044 = vpop.f32.mrb[0].mxu0
        %v1045 = vadd.f32 %v1004, %v1044
        %v1046 = vpop.f32.mrb[0].mxu0
        %v1047 = vadd.f32 %v1006, %v1046
        %v1048 = vpop.f32.mrb[0].mxu0
        %v1049 = vpop.f32.mrb[0].mxu0
        %1050 = vdwg.mxu0
        %1051 = vmatprep.subr.bf16.mxu0 %v742
        %1052 = vmatpush1.bf16.msra.mxu0 %v741
        %1053 = vmatprep.subr.bf16.mxu0 %v747
        %1054 = vmatpush1.bf16.msra.mxu0 %v746
        %1055 = vmatprep.subr.bf16.mxu0 %v752
        %1056 = vmatpush1.bf16.msra.mxu0 %v751
        %1057 = vmatprep.subr.bf16.mxu0 %v757
        %1058 = vmatpush1.bf16.msra.mxu0 %v756
        %1059 = vmatprep.subr.bf16.mxu0 %v762
        %1060 = vmatpush1.bf16.msra.mxu0 %v761
        %1061 = vmatprep.subr.bf16.mxu0 %v767
        %1062 = vmatpush1.bf16.msra.mxu0 %v766
        %1063 = vmatprep.subr.bf16.mxu0 %v772
        %1064 = vmatpush1.bf16.msra.mxu0 %v771
        %1065 = vmatprep.subr.bf16.mxu0 %v777
        %1066 = vmatpush1.bf16.msra.mxu0 %v776
        %1067 = vmatprep.subr.bf16.mxu0 %v782
        %1068 = vmatpush1.bf16.msra.mxu0 %v781
        %1069 = vmatprep.subr.bf16.mxu0 %v787
        %1070 = vmatpush1.bf16.msra.mxu0 %v786
        %1071 = vmatprep.subr.bf16.mxu0 %v792
        %1072 = vmatpush1.bf16.msra.mxu0 %v791
        %1073 = vmatprep.subr.bf16.mxu0 %v797
        %1074 = vmatpush1.bf16.msra.mxu0 %v796
        %1075 = vmatprep.subr.bf16.mxu0 %v802
        %1076 = vmatpush1.bf16.msra.mxu0 %v801
        %1077 = vmatprep.subr.bf16.mxu0 %v807
        %1078 = vmatpush1.bf16.msra.mxu0 %v806
        %1079 = vmatprep.subr.bf16.mxu0 %v812
        %1080 = vmatpush1.bf16.msra.mxu0 %v811
        %1081 = vmatprep.subr.bf16.mxu0 %v817
        %1082 = vmatpush1.bf16.msra.mxu0 %v816
        %1083 = vmatprep.mubr.bf16.mxu0 %v415
        %1084 = vmatmul.mubr.bf16.gmra.mrb[0].mxu0 %v408
        %v1085 = vpop.f32.mrb[0].mxu0
        %v1086 = vadd.f32 %v951, %v1085
        %v1087 = vpop.f32.mrb[0].mxu0
        %v1088 = vadd.f32 %v955, %v1087
        %v1089 = vpop.f32.mrb[0].mxu0
        %v1090 = vpop.f32.mrb[0].mxu0
        %1091 = vdwg.mxu0
        %1092 = vmatprep.subr.bf16.mxu0 %v822
        %1093 = vmatpush1.bf16.msra.mxu0 %v821
        %1094 = vmatprep.subr.bf16.mxu0 %v827
        %1095 = vmatpush1.bf16.msra.mxu0 %v826
        %1096 = vmatprep.subr.bf16.mxu0 %v832
        %1097 = vmatpush1.bf16.msra.mxu0 %v831
        %1098 = vmatprep.subr.bf16.mxu0 %v837
        %1099 = vmatpush1.bf16.msra.mxu0 %v836
        %1100 = vmatprep.subr.bf16.mxu0 0
        %1101 = vmatpush1.bf16.msra.mxu0 0
        %1102 = vmatprep.subr.bf16.mxu0 0
        %1103 = vmatpush1.bf16.msra.mxu0 0
        %1104 = vmatprep.subr.bf16.mxu0 0
        %1105 = vmatpush1.bf16.msra.mxu0 0
        %1106 = vmatprep.subr.bf16.mxu0 0
        %1107 = vmatpush1.bf16.msra.mxu0 0
        %1108 = vmatprep.subr.bf16.mxu0 0
        %1109 = vmatpush1.bf16.msra.mxu0 0
        %1110 = vmatprep.subr.bf16.mxu0 0
        %1111 = vmatpush1.bf16.msra.mxu0 0
        %1112 = vmatprep.subr.bf16.mxu0 0
        %1113 = vmatpush1.bf16.msra.mxu0 0
        %1114 = vmatprep.subr.bf16.mxu0 0
        %1115 = vmatpush1.bf16.msra.mxu0 0
        %1116 = vmatprep.subr.bf16.mxu0 0
        %1117 = vmatpush1.bf16.msra.mxu0 0
        %1118 = vmatprep.subr.bf16.mxu0 0
        %1119 = vmatpush1.bf16.msra.mxu0 0
        %1120 = vmatprep.subr.bf16.mxu0 0
        %1121 = vmatpush1.bf16.msra.mxu0 0
        %1122 = vmatprep.subr.bf16.mxu0 0
        %1123 = vmatpush1.bf16.msra.mxu0 0
        %1124 = vmatprep.mubr.bf16.mxu0 0
        %1125 = vmatmul.mubr.bf16.gmra.mrb[0].mxu0 %v967
        %v1126 = vpop.f32.mrb[0].mxu0
        %v1127 = vadd.f32 %v1086, %v1126
        %v1128 = vpop.f32.mrb[0].mxu0
        %v1129 = vadd.f32 %v1088, %v1128
        %v1130 = vpop.f32.mrb[0].mxu0
        %v1131 = vpop.f32.mrb[0].mxu0
        %1132 = vdwg.mxu0
        %1133 = vmatprep.subr.bf16.mxu0 0
        %1134 = vmatpush1.bf16.msra.mxu0 %v743
        %1135 = vmatprep.subr.bf16.mxu0 0
        %1136 = vmatpush1.bf16.msra.mxu0 %v748
        %1137 = vmatprep.subr.bf16.mxu0 0
        %1138 = vmatpush1.bf16.msra.mxu0 %v753
        %1139 = vmatprep.subr.bf16.mxu0 0
        %1140 = vmatpush1.bf16.msra.mxu0 %v758
        %1141 = vmatprep.subr.bf16.mxu0 0
        %1142 = vmatpush1.bf16.msra.mxu0 %v763
        %1143 = vmatprep.subr.bf16.mxu0 0
        %1144 = vmatpush1.bf16.msra.mxu0 %v768
        %1145 = vmatprep.subr.bf16.mxu0 0
        %1146 = vmatpush1.bf16.msra.mxu0 %v773
        %1147 = vmatprep.subr.bf16.mxu0 0
        %1148 = vmatpush1.bf16.msra.mxu0 %v778
        %1149 = vmatprep.subr.bf16.mxu0 0
        %1150 = vmatpush1.bf16.msra.mxu0 %v783
        %1151 = vmatprep.subr.bf16.mxu0 0
        %1152 = vmatpush1.bf16.msra.mxu0 %v788
        %1153 = vmatprep.subr.bf16.mxu0 0
        %1154 = vmatpush1.bf16.msra.mxu0 %v793
        %1155 = vmatprep.subr.bf16.mxu0 0
        %1156 = vmatpush1.bf16.msra.mxu0 %v798
        %1157 = vmatprep.subr.bf16.mxu0 0
        %1158 = vmatpush1.bf16.msra.mxu0 %v803
        %1159 = vmatprep.subr.bf16.mxu0 0
        %1160 = vmatpush1.bf16.msra.mxu0 %v808
        %1161 = vmatprep.subr.bf16.mxu0 0
        %1162 = vmatpush1.bf16.msra.mxu0 %v813
        %1163 = vmatprep.subr.bf16.mxu0 0
        %1164 = vmatpush1.bf16.msra.mxu0 %v818
        %1165 = vmatprep.mubr.bf16.mxu0 %v415
        %1166 = vmatmul.mubr.bf16.gmra.mrb[0].mxu0 %v408
        %v1167 = vpop.f32.mrb[0].mxu0
        %v1168 = vadd.f32 %v959, %v1167
        %v1169 = vpop.f32.mrb[0].mxu0
        %v1170 = vpop.f32.mrb[0].mxu0
        %v1171 = vpop.f32.mrb[0].mxu0
        %1172 = vdwg.mxu0
        %1173 = vmatprep.subr.bf16.mxu0 0
        %1174 = vmatpush1.bf16.msra.mxu0 %v823
        %1175 = vmatprep.subr.bf16.mxu0 0
        %1176 = vmatpush1.bf16.msra.mxu0 %v828
        %1177 = vmatprep.subr.bf16.mxu0 0
        %1178 = vmatpush1.bf16.msra.mxu0 %v833
        %1179 = vmatprep.subr.bf16.mxu0 0
        %1180 = vmatpush1.bf16.msra.mxu0 %v838
        %1181 = vmatprep.subr.bf16.mxu0 0
        %1182 = vmatpush1.bf16.msra.mxu0 0
        %1183 = vmatprep.subr.bf16.mxu0 0
        %1184 = vmatpush1.bf16.msra.mxu0 0
        %1185 = vmatprep.subr.bf16.mxu0 0
        %1186 = vmatpush1.bf16.msra.mxu0 0
        %1187 = vmatprep.subr.bf16.mxu0 0
        %1188 = vmatpush1.bf16.msra.mxu0 0
        %1189 = vmatprep.subr.bf16.mxu0 0
        %1190 = vmatpush1.bf16.msra.mxu0 0
        %1191 = vmatprep.subr.bf16.mxu0 0
        %1192 = vmatpush1.bf16.msra.mxu0 0
        %1193 = vmatprep.subr.bf16.mxu0 0
        %1194 = vmatpush1.bf16.msra.mxu0 0
        %1195 = vmatprep.subr.bf16.mxu0 0
        %1196 = vmatpush1.bf16.msra.mxu0 0
        %1197 = vmatprep.subr.bf16.mxu0 0
        %1198 = vmatpush1.bf16.msra.mxu0 0
        %1199 = vmatprep.subr.bf16.mxu0 0
        %1200 = vmatpush1.bf16.msra.mxu0 0
        %1201 = vmatprep.subr.bf16.mxu0 0
        %1202 = vmatpush1.bf16.msra.mxu0 0
        %1203 = vmatprep.subr.bf16.mxu0 0
        %1204 = vmatpush1.bf16.msra.mxu0 0
        %1205 = vmatprep.mubr.bf16.mxu0 0
        %1206 = vmatmul.mubr.bf16.gmra.mrb[0].mxu0 %v967
        %v1207 = vpop.f32.mrb[0].mxu0
        %v1208 = vadd.f32 %v1168, %v1207
        %v1209 = vpop.f32.mrb[0].mxu0
        %v1210 = vpop.f32.mrb[0].mxu0
        %v1211 = vpop.f32.mrb[0].mxu0
        %1212 = vdwg.mxu0
        %v1213 = vxor.u32 %v1045, 2147483648
        %v1214 = vxor.u32 %v1047, 2147483648
        %v1215 = vxor.u32 %v1127, 2147483648
        %v1216 = vxor.u32 %v1129, 2147483648
        %v1217 = vxor.u32 %v1208, 2147483648
        %v1218 = vmul.f32 %v1213, 1.442695
        %v1219 = vpow.pop %v1218
        %v1220 = vmul.f32 %v1214, 1.442695
        %v1221 = vpow.pop %v1220
        %v1222 = vmul.f32 %v1215, 1.442695
        %v1223 = vpow.pop %v1222
        %v1224 = vmul.f32 %v1216, 1.442695
        %v1225 = vpow.pop %v1224
        %v1226 = vmul.f32 %v1217, 1.442695
        %v1227 = vpow.pop %v1226
        %v1228 = vadd.f32 %v1219, 1.0
        %v1229 = vadd.f32 %v1221, 1.0
        %v1230 = vadd.f32 %v1223, 1.0
        %v1231 = vadd.f32 %v1225, 1.0
        %v1232 = vadd.f32 %v1227, 1.0
        %v1233 = vrcp.pop %v1228
        %v1234 = vmul.f32 1.0, %v1233
        %v1235 = vrcp.pop %v1229
        %v1236 = vmul.f32 1.0, %v1235
        %v1237 = vrcp.pop %v1230
        %v1238 = vmul.f32 1.0, %v1237
        %v1239 = vrcp.pop %v1231
        %v1240 = vmul.f32 1.0, %v1239
        %v1241 = vrcp.pop %v1232
        %v1242 = vmul.f32 1.0, %v1241
        %v1243 = vmul.f32 %v1045, %v1234
        %v1244 = vmul.f32 %v1047, %v1236
        %v1245 = vmul.f32 %v1127, %v1238
        %v1246 = vmul.f32 %v1129, %v1240
        %v1247 = vmul.f32 %v1208, %v1242
        %v1253 = vcombine.low %v1243, %v1244
        %v1254 = vcombine.low %v1245, %v1246
        %v1256 = vunpack.c.l.s4 1966171168
        %v1257 = vunpack.c.0.s8 %v1256
        %v1258 = vlaneseq
        %v1259 = vshrl.u32 %v1258, 7
        %v1260 = vsub.s32 %v1257, %v1259
        %v1261 = vrot.slane %v1253, %v1260
        %v1263 = vunpack.c.l.s4 1966171168
        %v1264 = vunpack.c.0.s8 %v1263
        %v1265 = vlaneseq
        %v1266 = vshrl.u32 %v1265, 7
        %v1267 = vsub.s32 %v1264, %v1266
        %v1268 = vrot.slane %v1254, %v1267
        %v1270 = vunpack.c.l.s4 1966171168
        %v1271 = vunpack.c.0.s8 %v1270
        %v1272 = vlaneseq
        %v1273 = vshrl.u32 %v1272, 7
        %v1274 = vsub.s32 %v1271, %v1273
        %v1275 = vrot.slane %v1247, %v1274
        %v1276 = vcombine.low %v1261, %v1268
        %v1278 = vunpack.c.l.s4 1966171168
        %v1279 = vunpack.c.0.s8 %v1278
        %v1280 = vlaneseq
        %v1281 = vshrl.u32 %v1280, 7
        %v1282 = vsub.s32 %v1279, %v1281
        %v1283 = vrot.slane %v1276, %v1282
        %v1285 = vunpack.c.l.s4 1966171168
        %v1286 = vunpack.c.0.s8 %v1285
        %v1287 = vlaneseq
        %v1288 = vshrl.u32 %v1287, 7
        %v1289 = vsub.s32 %v1286, %v1288
        %v1290 = vrot.slane %v1275, %v1289
        %v1291 = vcombine.low %v1283, %v1290
        %v1293 = vlaneseq
        %vm1294 = vcmp.ge.s32.totalorder %v1293, 0
        %vm1295 = vcmp.lt.s32.totalorder %v1293, 640
        %vm1296 = vmand %vm1294, %vm1295
        %1297 = vst.msk [vmem:[%s252] sm:$0x1f] %vm1296, %v1291
        %s1298 = sand.u32 %s131, 1
        %s1299 = scalar_lea.sflag [#allocation4], %s1298
        %s1300 = sand.u32 %s131, 1
        %s1301 = smul.addr %s1300, 5
        %s1302 = scalar_lea.vmem [#allocation5], %s1301
        // Predicated region
        $region37: #{pallas_linear.1} parent=31 // pred_check
          %p1303 = pneg %p141
        $region38: #{pallas_linear.1} parent=31 // pred_check_branch
          %1305 = sbr.rel (%p1303) target = $region40
        $region39: #{pallas_linear.1} parent=31 // pred_region
          %s1306 = smul.u32 5, %s26
          %s1308 = ssub.s32 80, 80
          %1309 = vsyncadd %s1299, %s1308
          %s1310 = smul.addr %s25, 10
          %s1311 = sadd.s32 %s1306, %s1310
          %s1312 = smul.addr %s1311, 16
          %s1313 = scalar_lea.hbm %s3, %s1312
          %s1315 = sshll.u32 %s1302, 4
          %s1316 = int_to_ptr.vmem [resolvable:$true] %s1315
          %1318 = dma.vmem_to_hbm [thread:$0]  %s1316, 80, %s1313, %s1299
        $region40: #{pallas_linear.1} parent=31 // pred_fallthru
          _
      $region32: #{pallas_linear.1} parent=5 // pred_fallthru
        _
      %p1319 = scmp.le.s32.totalorder 2, %s15
      // Predicated region
      $region41: #{pallas_linear.1} parent=5 // pred_check
        %p1320 = pneg %p1319
      $region42: #{pallas_linear.1} parent=5 // pred_check_branch
        %1322 = sbr.rel (%p1320) target = $region44
      $region43: #{pallas_linear.1} parent=5 // pred_region
        %s1323 = ssub.s32 %s15, 2
        // Predicated region
        $region45: #{pallas_linear.1} parent=43 // pred_check
          %p1324 = pneg %p147
        $region46: #{pallas_linear.1} parent=43 // pred_check_branch
          %1326 = sbr.rel (%p1324) target = $region48
        $region47: #{pallas_linear.1} parent=43 // pred_region
          %s1327 = sand.u32 %s132, 1
          %s1328 = scalar_lea.sflag [#allocation4], %s1327
          %s1329 = sand.u32 %s132, 1
          %s1330 = smul.addr %s1329, 5
          %s1331 = scalar_lea.vmem [#allocation5], %s1330
          %1332 = dma.done %s1328, 80
        $region48: #{pallas_linear.1} parent=43 // pred_fallthru
          _
      $region44: #{pallas_linear.1} parent=5 // pred_fallthru
        _
    $region6: #{pallas_linear.1} parent=1 // loop_footer
      %s19 = sadd.s32 1, %s15
    $region7: #{pallas_linear.1} parent=1 // loop_footer_branch
      %14 = sbr.rel target = $region3
    $region8: #{pallas_linear.1} parent=1 // loop_exit
      _
    %1333 = vsyncpa [#allocation3], 1
    %s1334 = scalar_lea.sflag [#allocation3], 1
    %1335 = vsyncpa %s1334, 1
    %1336 = vsyncpa [#allocation4], 1
    %s1337 = scalar_lea.sflag [#allocation4], 1
    %1338 = vsyncpa %s1337, 1

</llo_original>
